<compile_context>
chip_gen: v6e
topology: v6e:2x2x1
jax: 0.10.0
libtpu: 0.0.40
codegen_flags: <defaults>
</compile_context>

<pallas_src>
import jax
import jax.numpy as jnp
import numpy as np
from jax.experimental import pallas as pl
from jax.experimental.pallas import tpu as pltpu

_EPS = 1e-12  # torch.nn.functional.normalize default eps


def _make_style_loss_kernel(num_layers, groups):
    """groups: list of dicts, each with 'members': list of (layer_idx, row_offset, rows).
    Block-id / weight vectors arrive as the first 3*len(groups) kernel inputs."""
    num_groups = len(groups)

    def kernel(*refs):
        meta_refs = refs[:3 * num_groups]
        x_refs = refs[3 * num_groups: 3 * num_groups + num_layers]
        y_refs = refs[3 * num_groups + num_layers: 3 * num_groups + 2 * num_layers]
        out_ref = refs[3 * num_groups + 2 * num_layers]
        scratch = refs[3 * num_groups + 2 * num_layers + 1:]

        def normalize(v):
            # F.normalize(p=2, dim=-1): v / max(||v||, eps).
            # rsqrt(max(sumsq, eps^2)) == 1 / max(||v||, eps); rsqrt issues on the EUP.
            v32 = v.astype(jnp.float32)
            inv = jax.lax.rsqrt(
                jnp.maximum(jnp.sum(v32 * v32, axis=-1, keepdims=True), _EPS * _EPS))
            return v32 * inv

        total = jnp.float32(0.0)
        for g, grp in enumerate(groups):
            xbuf = scratch[2 * g]
            ybuf = scratch[2 * g + 1]

            # Normalize-on-copy into the concatenated staging buffers (static offsets).
            for layer_idx, off, rows in grp['members']:
                xbuf[pl.ds(off, rows), :] = normalize(
                    x_refs[layer_idx][...]).astype(xbuf.dtype)
                ybuf[pl.ds(off, rows), :] = normalize(
                    y_refs[layer_idx][...]).astype(ybuf.dtype)

            xcat = xbuf[...]
            ycat = ybuf[...]
            # One big gram per side on the MXU: (N, D) x (N, D)^T -> (N, N), f32 acc.
            gx = jnp.einsum("nd,md->nm", xcat, xcat,
                            preferred_element_type=jnp.float32)
            gy = jnp.einsum("nd,md->nm", ycat, ycat,
                            preferred_element_type=jnp.float32)
            diff = gx - gy

            # Block-diagonal weighted mask: only entries whose row and column belong to
            # the same (layer, batch) block contribute, weighted 1/(L * B_l * S_l^2).
            bid_col = meta_refs[3 * g][...]      # (N, 1) block ids
            bid_row = meta_refs[3 * g + 1][...]  # (1, N) block ids
            w_col = meta_refs[3 * g + 2][...]    # (N, 1) per-row MSE weights
            wmat = jnp.where(bid_col == bid_row, w_col, jnp.float32(0.0))
            total = total + jnp.sum(wmat * diff * diff)

        # Lane-dense store; the wrapper reads element [0, 0].
        out_ref[...] = jnp.full(out_ref.shape, total, dtype=out_ref.dtype)

    return kernel


def style_loss(input_features, target_features):
    """input_features / target_features: lists of arrays, each [S, B, D] (torch layout).
    Layers may have different shapes; everything is reduced in one kernel invocation."""
    assert len(input_features) == len(target_features) and len(input_features) > 0
    L = len(input_features)

    xs, ys, shapes = [], [], []
    for xf, yf in zip(input_features, target_features):
        assert xf.shape == yf.shape
        S, B, D = xf.shape
        # Free row-major collapse (no transpose, no extra HBM pass); row r <-> (s=r//B, b=r%B).
        xs.append(xf.reshape(S * B, D))
        ys.append(yf.reshape(S * B, D))
        shapes.append((S, B, D))

    # Group layers that share feature width D (and dtype) so each group needs exactly
    # one pair of MXU grams.
    groups, group_key_to_idx = [], {}
    for li, (xf, (S, B, D)) in enumerate(zip(xs, shapes)):
        key = (D, xf.dtype)
        if key not in group_key_to_idx:
            group_key_to_idx[key] = len(groups)
            groups.append({'D': D, 'dtype': xf.dtype, 'members': [], 'rows': 0})
        g = groups[group_key_to_idx[key]]
        rows = S * B
        g['members'].append((li, g['rows'], rows))
        g['rows'] += rows

    # Per-group block-id / weight metadata (one block per (layer, batch) gram).
    meta_inputs = []
    block_base = 0
    for g in groups:
        bid = np.empty((g['rows'],), np.float32)
        w = np.empty((g['rows'],), np.float32)
        for li, off, rows in g['members']:
            S, B, _D = shapes[li]
            r = np.arange(rows)
            bid[off:off + rows] = block_base + (r % B)
            w[off:off + rows] = 1.0 / (L * B * S * S)
            block_base += B
        meta_inputs += [jnp.asarray(bid.reshape(-1, 1)),
                        jnp.asarray(bid.reshape(1, -1)),
                        jnp.asarray(w.reshape(-1, 1))]

    # Advisory cost estimate for the surrounding XLA schedule.
    flops, transcendentals, bytes_accessed = 0, 0, 512  # lane-dense output row
    for x, (S, B, D) in zip(xs, shapes):
        rows = S * B
        flops += 2 * (3 * rows * D + rows)            # normalize both sides
        transcendentals += 2 * rows                   # rsqrt
        bytes_accessed += 2 * rows * D * x.dtype.itemsize
    for g in groups:
        N, D = g['rows'], g['D']
        flops += 2 * 2 * N * N * D + 5 * N * N        # two grams + masked squared diff
        bytes_accessed += 3 * N * 4                   # block-id / weight metadata

    vmem_spec = pl.BlockSpec(memory_space=pltpu.MemorySpace.VMEM)
    num_groups = len(groups)
    out = pl.pallas_call(
        _make_style_loss_kernel(L, groups),
        out_shape=jax.ShapeDtypeStruct((1, 128), jnp.float32),
        in_specs=[vmem_spec] * (3 * num_groups + 2 * L),
        out_specs=vmem_spec,
        scratch_shapes=[pltpu.VMEM((g['rows'], g['D']), g['dtype'])
                        for g in groups for _ in range(2)],
        cost_estimate=pl.CostEstimate(
            flops=int(flops),
            transcendentals=int(transcendentals),
            bytes_accessed=int(bytes_accessed)),
    )(*meta_inputs, *xs, *ys)
    return out[0, 0]


def _ref_style_loss(input_features, target_features):
    loss = 0.0
    for xf, yf in zip(input_features, target_features):
        xn = xf / jnp.maximum(jnp.linalg.norm(xf, axis=-1, keepdims=True), _EPS)
        yn = yf / jnp.maximum(jnp.linalg.norm(yf, axis=-1, keepdims=True), _EPS)
        gx = jnp.einsum("sbd,tbd->bst", xn, xn)
        gy = jnp.einsum("sbd,tbd->bst", yn, yn)
        loss += jnp.mean((gx - gy) ** 2)
    return loss / len(input_features)


if __name__ == "__main__":
    key = jax.random.PRNGKey(0)
    L = 3                  # number of feature layers
    S, B, D = 16, 2, 128   # torch layout per layer: [S, B, D]

    keys = jax.random.split(key, 2 * L)
    input_features = [jax.random.normal(keys[i], (S, B, D), dtype=jnp.float32)
                      for i in range(L)]
    target_features = [jax.random.normal(keys[L + i], (S, B, D), dtype=jnp.float32)
                       for i in range(L)]

    out = style_loss(input_features, target_features)
    out = jax.block_until_ready(out)

    ref = _ref_style_loss(input_features, target_features)
    assert jnp.allclose(out, ref, rtol=1e-5, atol=1e-6), (out, ref)

    print("KERNEL_OK")
</pallas_src>

<mosaic_0001>
module attributes {stable_mosaic.version = 11 : i64} {
  func.func @kernel(%arg0: memref<96x1xf32, #tpu.memory_space<vmem>>, %arg1: memref<1x96xf32, #tpu.memory_space<vmem>>, %arg2: memref<96x1xf32, #tpu.memory_space<vmem>>, %arg3: memref<32x128xf32, #tpu.memory_space<vmem>>, %arg4: memref<32x128xf32, #tpu.memory_space<vmem>>, %arg5: memref<32x128xf32, #tpu.memory_space<vmem>>, %arg6: memref<32x128xf32, #tpu.memory_space<vmem>>, %arg7: memref<32x128xf32, #tpu.memory_space<vmem>>, %arg8: memref<32x128xf32, #tpu.memory_space<vmem>>, %arg9: memref<1x128xf32, #tpu.memory_space<vmem>>, %arg10: memref<96x128xf32, #tpu.memory_space<vmem>>, %arg11: memref<96x128xf32, #tpu.memory_space<vmem>>) attributes {dimension_semantics = [], scalar_prefetch = 0 : i64, scratch_operands = 2 : i64, tpu.core_type = #tpu.core_type<tc>} {
    %c0 = arith.constant 0 : index
    %c0_0 = arith.constant 0 : index
    %0 = vector.load %arg3[%c0, %c0_0] : memref<32x128xf32, #tpu.memory_space<vmem>>, vector<32x128xf32>
    %1 = arith.mulf %0, %0 : vector<32x128xf32>
    %cst = arith.constant dense<0.000000e+00> : vector<32xf32>
    %2 = vector.multi_reduction <add>, %1, %cst [1] : vector<32x128xf32> to vector<32xf32>
    %3 = vector.shape_cast %2 : vector<32xf32> to vector<32x1xf32>
    %cst_1 = arith.constant 1.000000e-24 : f32
    %4 = vector.broadcast %cst_1 : f32 to vector<32x1xf32>
    %5 = arith.maximumf %3, %4 : vector<32x1xf32>
    %6 = math.rsqrt %5 : vector<32x1xf32>
    %7 = vector.broadcast %6 : vector<32x1xf32> to vector<32x128xf32>
    %8 = arith.mulf %0, %7 : vector<32x128xf32>
    %c0_2 = arith.constant 0 : index
    %c0_3 = arith.constant 0 : index
    %9 = vector.load %arg10[%c0_2, %c0_3] : memref<96x128xf32, #tpu.memory_space<vmem>>, vector<32x128xf32>
    tpu.vector_store %arg10[%c0_2, %c0_3], %8 {strides = array<i32>} : memref<96x128xf32, #tpu.memory_space<vmem>>, vector<32x128xf32>,
    %c0_4 = arith.constant 0 : index
    %c0_5 = arith.constant 0 : index
    %10 = vector.load %arg6[%c0_4, %c0_5] : memref<32x128xf32, #tpu.memory_space<vmem>>, vector<32x128xf32>
    %11 = arith.mulf %10, %10 : vector<32x128xf32>
    %cst_6 = arith.constant dense<0.000000e+00> : vector<32xf32>
    %12 = vector.multi_reduction <add>, %11, %cst_6 [1] : vector<32x128xf32> to vector<32xf32>
    %13 = vector.shape_cast %12 : vector<32xf32> to vector<32x1xf32>
    %cst_7 = arith.constant 1.000000e-24 : f32
    %14 = vector.broadcast %cst_7 : f32 to vector<32x1xf32>
    %15 = arith.maximumf %13, %14 : vector<32x1xf32>
    %16 = math.rsqrt %15 : vector<32x1xf32>
    %17 = vector.broadcast %16 : vector<32x1xf32> to vector<32x128xf32>
    %18 = arith.mulf %10, %17 : vector<32x128xf32>
    %c0_8 = arith.constant 0 : index
    %c0_9 = arith.constant 0 : index
    %19 = vector.load %arg11[%c0_8, %c0_9] : memref<96x128xf32, #tpu.memory_space<vmem>>, vector<32x128xf32>
    tpu.vector_store %arg11[%c0_8, %c0_9], %18 {strides = array<i32>} : memref<96x128xf32, #tpu.memory_space<vmem>>, vector<32x128xf32>,
    %c0_10 = arith.constant 0 : index
    %c0_11 = arith.constant 0 : index
    %20 = vector.load %arg4[%c0_10, %c0_11] : memref<32x128xf32, #tpu.memory_space<vmem>>, vector<32x128xf32>
    %21 = arith.mulf %20, %20 : vector<32x128xf32>
    %cst_12 = arith.constant dense<0.000000e+00> : vector<32xf32>
    %22 = vector.multi_reduction <add>, %21, %cst_12 [1] : vector<32x128xf32> to vector<32xf32>
    %23 = vector.shape_cast %22 : vector<32xf32> to vector<32x1xf32>
    %cst_13 = arith.constant 1.000000e-24 : f32
    %24 = vector.broadcast %cst_13 : f32 to vector<32x1xf32>
    %25 = arith.maximumf %23, %24 : vector<32x1xf32>
    %26 = math.rsqrt %25 : vector<32x1xf32>
    %27 = vector.broadcast %26 : vector<32x1xf32> to vector<32x128xf32>
    %28 = arith.mulf %20, %27 : vector<32x128xf32>
    %c32 = arith.constant 32 : index
    %c0_14 = arith.constant 0 : index
    %29 = vector.load %arg10[%c32, %c0_14] : memref<96x128xf32, #tpu.memory_space<vmem>>, vector<32x128xf32>
    tpu.vector_store %arg10[%c32, %c0_14], %28 {strides = array<i32>} : memref<96x128xf32, #tpu.memory_space<vmem>>, vector<32x128xf32>,
    %c0_15 = arith.constant 0 : index
    %c0_16 = arith.constant 0 : index
    %30 = vector.load %arg7[%c0_15, %c0_16] : memref<32x128xf32, #tpu.memory_space<vmem>>, vector<32x128xf32>
    %31 = arith.mulf %30, %30 : vector<32x128xf32>
    %cst_17 = arith.constant dense<0.000000e+00> : vector<32xf32>
    %32 = vector.multi_reduction <add>, %31, %cst_17 [1] : vector<32x128xf32> to vector<32xf32>
    %33 = vector.shape_cast %32 : vector<32xf32> to vector<32x1xf32>
    %cst_18 = arith.constant 1.000000e-24 : f32
    %34 = vector.broadcast %cst_18 : f32 to vector<32x1xf32>
    %35 = arith.maximumf %33, %34 : vector<32x1xf32>
    %36 = math.rsqrt %35 : vector<32x1xf32>
    %37 = vector.broadcast %36 : vector<32x1xf32> to vector<32x128xf32>
    %38 = arith.mulf %30, %37 : vector<32x128xf32>
    %c32_19 = arith.constant 32 : index
    %c0_20 = arith.constant 0 : index
    %39 = vector.load %arg11[%c32_19, %c0_20] : memref<96x128xf32, #tpu.memory_space<vmem>>, vector<32x128xf32>
    tpu.vector_store %arg11[%c32_19, %c0_20], %38 {strides = array<i32>} : memref<96x128xf32, #tpu.memory_space<vmem>>, vector<32x128xf32>,
    %c0_21 = arith.constant 0 : index
    %c0_22 = arith.constant 0 : index
    %40 = vector.load %arg5[%c0_21, %c0_22] : memref<32x128xf32, #tpu.memory_space<vmem>>, vector<32x128xf32>
    %41 = arith.mulf %40, %40 : vector<32x128xf32>
    %cst_23 = arith.constant dense<0.000000e+00> : vector<32xf32>
    %42 = vector.multi_reduction <add>, %41, %cst_23 [1] : vector<32x128xf32> to vector<32xf32>
    %43 = vector.shape_cast %42 : vector<32xf32> to vector<32x1xf32>
    %cst_24 = arith.constant 1.000000e-24 : f32
    %44 = vector.broadcast %cst_24 : f32 to vector<32x1xf32>
    %45 = arith.maximumf %43, %44 : vector<32x1xf32>
    %46 = math.rsqrt %45 : vector<32x1xf32>
    %47 = vector.broadcast %46 : vector<32x1xf32> to vector<32x128xf32>
    %48 = arith.mulf %40, %47 : vector<32x128xf32>
    %c64 = arith.constant 64 : index
    %c0_25 = arith.constant 0 : index
    %49 = vector.load %arg10[%c64, %c0_25] : memref<96x128xf32, #tpu.memory_space<vmem>>, vector<32x128xf32>
    tpu.vector_store %arg10[%c64, %c0_25], %48 {strides = array<i32>} : memref<96x128xf32, #tpu.memory_space<vmem>>, vector<32x128xf32>,
    %c0_26 = arith.constant 0 : index
    %c0_27 = arith.constant 0 : index
    %50 = vector.load %arg8[%c0_26, %c0_27] : memref<32x128xf32, #tpu.memory_space<vmem>>, vector<32x128xf32>
    %51 = arith.mulf %50, %50 : vector<32x128xf32>
    %cst_28 = arith.constant dense<0.000000e+00> : vector<32xf32>
    %52 = vector.multi_reduction <add>, %51, %cst_28 [1] : vector<32x128xf32> to vector<32xf32>
    %53 = vector.shape_cast %52 : vector<32xf32> to vector<32x1xf32>
    %cst_29 = arith.constant 1.000000e-24 : f32
    %54 = vector.broadcast %cst_29 : f32 to vector<32x1xf32>
    %55 = arith.maximumf %53, %54 : vector<32x1xf32>
    %56 = math.rsqrt %55 : vector<32x1xf32>
    %57 = vector.broadcast %56 : vector<32x1xf32> to vector<32x128xf32>
    %58 = arith.mulf %50, %57 : vector<32x128xf32>
    %c64_30 = arith.constant 64 : index
    %c0_31 = arith.constant 0 : index
    %59 = vector.load %arg11[%c64_30, %c0_31] : memref<96x128xf32, #tpu.memory_space<vmem>>, vector<32x128xf32>
    tpu.vector_store %arg11[%c64_30, %c0_31], %58 {strides = array<i32>} : memref<96x128xf32, #tpu.memory_space<vmem>>, vector<32x128xf32>,
    %c0_32 = arith.constant 0 : index
    %c0_33 = arith.constant 0 : index
    %60 = vector.load %arg10[%c0_32, %c0_33] : memref<96x128xf32, #tpu.memory_space<vmem>>, vector<96x128xf32>
    %c0_34 = arith.constant 0 : index
    %c0_35 = arith.constant 0 : index
    %61 = vector.load %arg11[%c0_34, %c0_35] : memref<96x128xf32, #tpu.memory_space<vmem>>, vector<96x128xf32>
    "tpu.trace_start"() <{level = 10 : i32, message = "nd,md->nm"}> : () -> ()
    %cst_36 = arith.constant dense<0.000000e+00> : vector<96x96xf32>
    %62 = tpu.matmul %60, %60, %cst_36 {dimension_numbers = #tpu.dot_dimension_numbers<[1], [1], [0], [0], [0, 0, 1, 0], [], []>} : vector<96x128xf32>, vector<96x128xf32>, vector<96x96xf32> -> vector<96x96xf32>
    %cst_37 = arith.constant dense<0.000000e+00> : vector<96x96xf32>
    %63 = tpu.matmul %61, %61, %cst_37 {dimension_numbers = #tpu.dot_dimension_numbers<[1], [1], [0], [0], [0, 0, 1, 0], [], []>} : vector<96x128xf32>, vector<96x128xf32>, vector<96x96xf32> -> vector<96x96xf32>
    "tpu.trace_stop"() : () -> ()
    %64 = arith.subf %62, %63 : vector<96x96xf32>
    %c0_38 = arith.constant 0 : index
    %c0_39 = arith.constant 0 : index
    %65 = vector.load %arg0[%c0_38, %c0_39] : memref<96x1xf32, #tpu.memory_space<vmem>>, vector<96x1xf32>
    %c0_40 = arith.constant 0 : index
    %c0_41 = arith.constant 0 : index
    %66 = vector.load %arg1[%c0_40, %c0_41] : memref<1x96xf32, #tpu.memory_space<vmem>>, vector<1x96xf32>
    %c0_42 = arith.constant 0 : index
    %c0_43 = arith.constant 0 : index
    %67 = vector.load %arg2[%c0_42, %c0_43] : memref<96x1xf32, #tpu.memory_space<vmem>>, vector<96x1xf32>
    %68 = vector.broadcast %65 : vector<96x1xf32> to vector<96x96xf32>
    %69 = vector.broadcast %66 : vector<1x96xf32> to vector<96x96xf32>
    %70 = arith.cmpf oeq, %68, %69 : vector<96x96xf32>
    %cst_44 = arith.constant 0.000000e+00 : f32
    %71 = vector.shape_cast %67 : vector<96x1xf32> to vector<96x1xf32>
    %72 = vector.broadcast %71 : vector<96x1xf32> to vector<96x96xf32>
    %73 = vector.broadcast %cst_44 : f32 to vector<96x96xf32>
    %74 = arith.select %70, %72, %73 : vector<96x96xi1>, vector<96x96xf32>
    %75 = arith.mulf %74, %64 : vector<96x96xf32>
    %76 = arith.mulf %75, %64 : vector<96x96xf32>
    %77 = vector.shape_cast %76 : vector<96x96xf32> to vector<1x96x96xf32>
    %cst_45 = arith.constant dense<0.000000e+00> : vector<1xf32>
    %78 = vector.multi_reduction <add>, %77, %cst_45 [1, 2] : vector<1x96x96xf32> to vector<1xf32>
    %79 = vector.shape_cast %78 : vector<1xf32> to vector<1x1x1xf32>
    %80 = vector.extract %79[0, 0, 0] : f32 from vector<1x1x1xf32>
    %cst_46 = arith.constant 0.000000e+00 : f32
    %81 = arith.addf %cst_46, %80 : f32
    %82 = vector.broadcast %81 : f32 to vector<1x128xf32>
    %c0_47 = arith.constant 0 : index
    %c0_48 = arith.constant 0 : index
    %83 = vector.load %arg9[%c0_47, %c0_48] : memref<1x128xf32, #tpu.memory_space<vmem>>, vector<1x128xf32>
    tpu.vector_store %arg9[%c0_47, %c0_48], %82 {strides = array<i32>} : memref<1x128xf32, #tpu.memory_space<vmem>>, vector<1x128xf32>,
    return
  }
}

</mosaic_0001>

<llo_original>
// kernel: tpu_custom_call.1
$region0: #{tpu_custom_call.1}
  #allocation0 [shape = 'u32[]', space=smem, size = 0x4, offset = 0x4, fixed_abs, tag = 'smem constant byte address 0x4 - core index']
  #allocation1 [shape = 'u32[144,128]{1,0:T(1,128)}', space=vmem, size = 0x12000, scoped, tag = 'internal scratch']
  #allocation2 [shape = 'f32[96,128]{1,0:T(8,128)}', space=vmem, size = 0xc000, scoped, tag = 'scratch operand']
  #allocation3 [shape = 'f32[96,128]{1,0:T(8,128)}', space=vmem, size = 0xc000, scoped, tag = 'scratch operand']
  %s0 = inlined_call_operand.vmem [shape: f32[96,1], index: 0, kind: input, shape index: {}]
  %s1 = inlined_call_operand.vmem [shape: f32[1,96], index: 1, kind: input, shape index: {}]
  %s2 = inlined_call_operand.vmem [shape: f32[96,1], index: 2, kind: input, shape index: {}]
  %s3 = inlined_call_operand.vmem [shape: f32[32,128], index: 3, kind: input, shape index: {}]
  %s4 = inlined_call_operand.vmem [shape: f32[32,128], index: 4, kind: input, shape index: {}]
  %s5 = inlined_call_operand.vmem [shape: f32[32,128], index: 5, kind: input, shape index: {}]
  %s6 = inlined_call_operand.vmem [shape: f32[32,128], index: 6, kind: input, shape index: {}]
  %s7 = inlined_call_operand.vmem [shape: f32[32,128], index: 7, kind: input, shape index: {}]
  %s8 = inlined_call_operand.vmem [shape: f32[32,128], index: 8, kind: input, shape index: {}]
  %s9 = inlined_call_operand.hbm [shape: f32[1,128], index: 9, kind: output, shape index: {}]
  %s10 = sld [smem:[#allocation0]]
  $region46: #{tpu_custom_call.1} parent=0
    _
  %s12 = ssub.s32 1, %s10
  %s13 = scalar_select 0, %s12, %s10
  $region1: #{tpu_custom_call.1} parent=0
    #allocation4 [shape = 'u8[512]{0}', space=vmem, size = 0x400, scoped, tag = 'output window, operand 0, single buffered']
    #allocation5 [shape = 's32[1]{0}', space=sflag, size = 0x4, scoped, tag = 'scoped memory for tpu_custom_call.1']
    %14 = vsyncpa [#allocation5], 0
    // Predicated region
    $region2: #{tpu_custom_call.1} parent=1 // pred_check
      _
    $region3: #{tpu_custom_call.1} parent=1 // pred_check_branch
      %16 = sbr.rel (0) target = $region5
    $region4: #{tpu_custom_call.1} parent=1 // pred_region
      _
    $region5: #{tpu_custom_call.1} parent=1 // pred_fallthru
      _
    // Predicated region
    $region6: #{tpu_custom_call.1} parent=1 // pred_check
      _
    $region7: #{tpu_custom_call.1} parent=1 // pred_check_branch
      %18 = sbr.rel (0) target = $region9
    $region8: #{tpu_custom_call.1} parent=1 // pred_region
      _
    $region9: #{tpu_custom_call.1} parent=1 // pred_fallthru
      _
    // Predicated region
    $region10: #{tpu_custom_call.1} parent=1 // pred_check
      _
    $region11: #{tpu_custom_call.1} parent=1 // pred_check_branch
      %20 = sbr.rel (0) target = $region13
    $region12: #{tpu_custom_call.1} parent=1 // pred_region
      _
    $region13: #{tpu_custom_call.1} parent=1 // pred_fallthru
      _
    // Predicated region
    $region14: #{tpu_custom_call.1} parent=1 // pred_check
      _
    $region15: #{tpu_custom_call.1} parent=1 // pred_check_branch
      %22 = sbr.rel (0) target = $region17
    $region16: #{tpu_custom_call.1} parent=1 // pred_region
      _
    $region17: #{tpu_custom_call.1} parent=1 // pred_fallthru
      _
    // Predicated region
    $region18: #{tpu_custom_call.1} parent=1 // pred_check
      _
    $region19: #{tpu_custom_call.1} parent=1 // pred_check_branch
      %24 = sbr.rel (0) target = $region21
    $region20: #{tpu_custom_call.1} parent=1 // pred_region
      _
    $region21: #{tpu_custom_call.1} parent=1 // pred_fallthru
      _
    // Predicated region
    $region22: #{tpu_custom_call.1} parent=1 // pred_check
      _
    $region23: #{tpu_custom_call.1} parent=1 // pred_check_branch
      %26 = sbr.rel (0) target = $region25
    $region24: #{tpu_custom_call.1} parent=1 // pred_region
      _
    $region25: #{tpu_custom_call.1} parent=1 // pred_fallthru
      _
    // Predicated region
    $region26: #{tpu_custom_call.1} parent=1 // pred_check
      _
    $region27: #{tpu_custom_call.1} parent=1 // pred_check_branch
      %28 = sbr.rel (0) target = $region29
    $region28: #{tpu_custom_call.1} parent=1 // pred_region
      _
    $region29: #{tpu_custom_call.1} parent=1 // pred_fallthru
      _
    // Predicated region
    $region30: #{tpu_custom_call.1} parent=1 // pred_check
      _
    $region31: #{tpu_custom_call.1} parent=1 // pred_check_branch
      %30 = sbr.rel (0) target = $region33
    $region32: #{tpu_custom_call.1} parent=1 // pred_region
      _
    $region33: #{tpu_custom_call.1} parent=1 // pred_fallthru
      _
    // Predicated region
    $region34: #{tpu_custom_call.1} parent=1 // pred_check
      _
    $region35: #{tpu_custom_call.1} parent=1 // pred_check_branch
      %32 = sbr.rel (0) target = $region37
    $region36: #{tpu_custom_call.1} parent=1 // pred_region
      _
    $region37: #{tpu_custom_call.1} parent=1 // pred_fallthru
      _
    %v33 = vld [vmem:[%s3] sm:$0xff]
    %v34 = vld [vmem:[%s3 + $0x8] sm:$0xff]
    %v35 = vld [vmem:[%s3 + $0x10] sm:$0xff]
    %v36 = vld [vmem:[%s3 + $0x18] sm:$0xff]
    %v37 = vmul.f32 %v33, %v33
    %v38 = vmul.f32 %v34, %v34
    %v39 = vmul.f32 %v35, %v35
    %v40 = vmul.f32 %v36, %v36
    %41 = vadd.xlane.f32.xlu0 %v37
    %v42 = vpop.xlane.xlu0 %41
    %43 = vadd.xlane.f32.xlu0 %v38
    %v44 = vpop.xlane.xlu0 %43
    %45 = vadd.xlane.f32.xlu0 %v39
    %v46 = vpop.xlane.xlu0 %45
    %47 = vadd.xlane.f32.xlu0 %v40
    %v48 = vpop.xlane.xlu0 %47
    %v49 = vmax.f32 %v42, 1e-24
    %v50 = vmax.f32 %v44, 1e-24
    %v51 = vmax.f32 %v46, 1e-24
    %v52 = vmax.f32 %v48, 1e-24
    %v53 = vrsqrt.pop %v49
    %v54 = vrsqrt.pop %v50
    %v55 = vrsqrt.pop %v51
    %v56 = vrsqrt.pop %v52
    %v57 = vmul.f32 %v33, %v53
    %v58 = vmul.f32 %v34, %v54
    %v59 = vmul.f32 %v35, %v55
    %v60 = vmul.f32 %v36, %v56
    %61 = vst [vmem:[#allocation2] sm:$0xff] %v57
    %62 = vst [vmem:[#allocation2 + $0x8] sm:$0xff] %v58
    %63 = vst [vmem:[#allocation2 + $0x10] sm:$0xff] %v59
    %64 = vst [vmem:[#allocation2 + $0x18] sm:$0xff] %v60
    %v65 = vld [vmem:[%s6] sm:$0xff]
    %v66 = vld [vmem:[%s6 + $0x8] sm:$0xff]
    %v67 = vld [vmem:[%s6 + $0x10] sm:$0xff]
    %v68 = vld [vmem:[%s6 + $0x18] sm:$0xff]
    %v69 = vmul.f32 %v65, %v65
    %v70 = vmul.f32 %v66, %v66
    %v71 = vmul.f32 %v67, %v67
    %v72 = vmul.f32 %v68, %v68
    %73 = vadd.xlane.f32.xlu0 %v69
    %v74 = vpop.xlane.xlu0 %73
    %75 = vadd.xlane.f32.xlu0 %v70
    %v76 = vpop.xlane.xlu0 %75
    %77 = vadd.xlane.f32.xlu0 %v71
    %v78 = vpop.xlane.xlu0 %77
    %79 = vadd.xlane.f32.xlu0 %v72
    %v80 = vpop.xlane.xlu0 %79
    %v81 = vmax.f32 %v74, 1e-24
    %v82 = vmax.f32 %v76, 1e-24
    %v83 = vmax.f32 %v78, 1e-24
    %v84 = vmax.f32 %v80, 1e-24
    %v85 = vrsqrt.pop %v81
    %v86 = vrsqrt.pop %v82
    %v87 = vrsqrt.pop %v83
    %v88 = vrsqrt.pop %v84
    %v89 = vmul.f32 %v65, %v85
    %v90 = vmul.f32 %v66, %v86
    %v91 = vmul.f32 %v67, %v87
    %v92 = vmul.f32 %v68, %v88
    %93 = vst [vmem:[#allocation3] sm:$0xff] %v89
    %94 = vst [vmem:[#allocation3 + $0x8] sm:$0xff] %v90
    %95 = vst [vmem:[#allocation3 + $0x10] sm:$0xff] %v91
    %96 = vst [vmem:[#allocation3 + $0x18] sm:$0xff] %v92
    %v97 = vld [vmem:[%s4] sm:$0xff]
    %v98 = vld [vmem:[%s4 + $0x8] sm:$0xff]
    %v99 = vld [vmem:[%s4 + $0x10] sm:$0xff]
    %v100 = vld [vmem:[%s4 + $0x18] sm:$0xff]
    %v101 = vmul.f32 %v97, %v97
    %v102 = vmul.f32 %v98, %v98
    %v103 = vmul.f32 %v99, %v99
    %v104 = vmul.f32 %v100, %v100
    %105 = vadd.xlane.f32.xlu0 %v101
    %v106 = vpop.xlane.xlu0 %105
    %107 = vadd.xlane.f32.xlu0 %v102
    %v108 = vpop.xlane.xlu0 %107
    %109 = vadd.xlane.f32.xlu0 %v103
    %v110 = vpop.xlane.xlu0 %109
    %111 = vadd.xlane.f32.xlu0 %v104
    %v112 = vpop.xlane.xlu0 %111
    %v113 = vmax.f32 %v106, 1e-24
    %v114 = vmax.f32 %v108, 1e-24
    %v115 = vmax.f32 %v110, 1e-24
    %v116 = vmax.f32 %v112, 1e-24
    %v117 = vrsqrt.pop %v113
    %v118 = vrsqrt.pop %v114
    %v119 = vrsqrt.pop %v115
    %v120 = vrsqrt.pop %v116
    %v121 = vmul.f32 %v97, %v117
    %v122 = vmul.f32 %v98, %v118
    %v123 = vmul.f32 %v99, %v119
    %v124 = vmul.f32 %v100, %v120
    %125 = vst [vmem:[#allocation2 + $0x20] sm:$0xff] %v121
    %126 = vst [vmem:[#allocation2 + $0x28] sm:$0xff] %v122
    %127 = vst [vmem:[#allocation2 + $0x30] sm:$0xff] %v123
    %128 = vst [vmem:[#allocation2 + $0x38] sm:$0xff] %v124
    %v129 = vld [vmem:[%s7] sm:$0xff]
    %v130 = vld [vmem:[%s7 + $0x8] sm:$0xff]
    %v131 = vld [vmem:[%s7 + $0x10] sm:$0xff]
    %v132 = vld [vmem:[%s7 + $0x18] sm:$0xff]
    %v133 = vmul.f32 %v129, %v129
    %v134 = vmul.f32 %v130, %v130
    %v135 = vmul.f32 %v131, %v131
    %v136 = vmul.f32 %v132, %v132
    %137 = vadd.xlane.f32.xlu0 %v133
    %v138 = vpop.xlane.xlu0 %137
    %139 = vadd.xlane.f32.xlu0 %v134
    %v140 = vpop.xlane.xlu0 %139
    %141 = vadd.xlane.f32.xlu0 %v135
    %v142 = vpop.xlane.xlu0 %141
    %143 = vadd.xlane.f32.xlu0 %v136
    %v144 = vpop.xlane.xlu0 %143
    %v145 = vmax.f32 %v138, 1e-24
    %v146 = vmax.f32 %v140, 1e-24
    %v147 = vmax.f32 %v142, 1e-24
    %v148 = vmax.f32 %v144, 1e-24
    %v149 = vrsqrt.pop %v145
    %v150 = vrsqrt.pop %v146
    %v151 = vrsqrt.pop %v147
    %v152 = vrsqrt.pop %v148
    %v153 = vmul.f32 %v129, %v149
    %v154 = vmul.f32 %v130, %v150
    %v155 = vmul.f32 %v131, %v151
    %v156 = vmul.f32 %v132, %v152
    %157 = vst [vmem:[#allocation3 + $0x20] sm:$0xff] %v153
    %158 = vst [vmem:[#allocation3 + $0x28] sm:$0xff] %v154
    %159 = vst [vmem:[#allocation3 + $0x30] sm:$0xff] %v155
    %160 = vst [vmem:[#allocation3 + $0x38] sm:$0xff] %v156
    %v161 = vld [vmem:[%s5] sm:$0xff]
    %v162 = vld [vmem:[%s5 + $0x8] sm:$0xff]
    %v163 = vld [vmem:[%s5 + $0x10] sm:$0xff]
    %v164 = vld [vmem:[%s5 + $0x18] sm:$0xff]
    %v165 = vmul.f32 %v161, %v161
    %v166 = vmul.f32 %v162, %v162
    %v167 = vmul.f32 %v163, %v163
    %v168 = vmul.f32 %v164, %v164
    %169 = vadd.xlane.f32.xlu0 %v165
    %v170 = vpop.xlane.xlu0 %169
    %171 = vadd.xlane.f32.xlu0 %v166
    %v172 = vpop.xlane.xlu0 %171
    %173 = vadd.xlane.f32.xlu0 %v167
    %v174 = vpop.xlane.xlu0 %173
    %175 = vadd.xlane.f32.xlu0 %v168
    %v176 = vpop.xlane.xlu0 %175
    %v177 = vmax.f32 %v170, 1e-24
    %v178 = vmax.f32 %v172, 1e-24
    %v179 = vmax.f32 %v174, 1e-24
    %v180 = vmax.f32 %v176, 1e-24
    %v181 = vrsqrt.pop %v177
    %v182 = vrsqrt.pop %v178
    %v183 = vrsqrt.pop %v179
    %v184 = vrsqrt.pop %v180
    %v185 = vmul.f32 %v161, %v181
    %v186 = vmul.f32 %v162, %v182
    %v187 = vmul.f32 %v163, %v183
    %v188 = vmul.f32 %v164, %v184
    %189 = vst [vmem:[#allocation2 + $0x40] sm:$0xff] %v185
    %190 = vst [vmem:[#allocation2 + $0x48] sm:$0xff] %v186
    %191 = vst [vmem:[#allocation2 + $0x50] sm:$0xff] %v187
    %192 = vst [vmem:[#allocation2 + $0x58] sm:$0xff] %v188
    %v193 = vld [vmem:[%s8] sm:$0xff]
    %v194 = vld [vmem:[%s8 + $0x8] sm:$0xff]
    %v195 = vld [vmem:[%s8 + $0x10] sm:$0xff]
    %v196 = vld [vmem:[%s8 + $0x18] sm:$0xff]
    %v197 = vmul.f32 %v193, %v193
    %v198 = vmul.f32 %v194, %v194
    %v199 = vmul.f32 %v195, %v195
    %v200 = vmul.f32 %v196, %v196
    %201 = vadd.xlane.f32.xlu0 %v197
    %v202 = vpop.xlane.xlu0 %201
    %203 = vadd.xlane.f32.xlu0 %v198
    %v204 = vpop.xlane.xlu0 %203
    %205 = vadd.xlane.f32.xlu0 %v199
    %v206 = vpop.xlane.xlu0 %205
    %207 = vadd.xlane.f32.xlu0 %v200
    %v208 = vpop.xlane.xlu0 %207
    %v209 = vmax.f32 %v202, 1e-24
    %v210 = vmax.f32 %v204, 1e-24
    %v211 = vmax.f32 %v206, 1e-24
    %v212 = vmax.f32 %v208, 1e-24
    %v213 = vrsqrt.pop %v209
    %v214 = vrsqrt.pop %v210
    %v215 = vrsqrt.pop %v211
    %v216 = vrsqrt.pop %v212
    %v217 = vmul.f32 %v193, %v213
    %v218 = vmul.f32 %v194, %v214
    %v219 = vmul.f32 %v195, %v215
    %v220 = vmul.f32 %v196, %v216
    %221 = vst [vmem:[#allocation3 + $0x40] sm:$0xff] %v217
    %222 = vst [vmem:[#allocation3 + $0x48] sm:$0xff] %v218
    %223 = vst [vmem:[#allocation3 + $0x50] sm:$0xff] %v219
    %224 = vst [vmem:[#allocation3 + $0x58] sm:$0xff] %v220
    %v225 = vld [vmem:[#allocation2] sm:$0xff]
    %v226 = vld [vmem:[#allocation2 + $0x8] sm:$0xff]
    %v227 = vld [vmem:[#allocation2 + $0x10] sm:$0xff]
    %v228 = vld [vmem:[#allocation2 + $0x18] sm:$0xff]
    %v229 = vld [vmem:[#allocation2 + $0x20] sm:$0xff]
    %v230 = vld [vmem:[#allocation2 + $0x28] sm:$0xff]
    %v231 = vld [vmem:[#allocation2 + $0x30] sm:$0xff]
    %v232 = vld [vmem:[#allocation2 + $0x38] sm:$0xff]
    %v233 = vld [vmem:[#allocation2 + $0x40] sm:$0xff]
    %v234 = vld [vmem:[#allocation2 + $0x48] sm:$0xff]
    %v235 = vld [vmem:[#allocation2 + $0x50] sm:$0xff]
    %v236 = vld [vmem:[#allocation2 + $0x58] sm:$0xff]
    %v237 = vld [vmem:[#allocation3] sm:$0xff]
    %v238 = vld [vmem:[#allocation3 + $0x8] sm:$0xff]
    %v239 = vld [vmem:[#allocation3 + $0x10] sm:$0xff]
    %v240 = vld [vmem:[#allocation3 + $0x18] sm:$0xff]
    %v241 = vld [vmem:[#allocation3 + $0x20] sm:$0xff]
    %v242 = vld [vmem:[#allocation3 + $0x28] sm:$0xff]
    %v243 = vld [vmem:[#allocation3 + $0x30] sm:$0xff]
    %v244 = vld [vmem:[#allocation3 + $0x38] sm:$0xff]
    %v245 = vld [vmem:[#allocation3 + $0x40] sm:$0xff]
    %v246 = vld [vmem:[#allocation3 + $0x48] sm:$0xff]
    %v247 = vld [vmem:[#allocation3 + $0x50] sm:$0xff]
    %v248 = vld [vmem:[#allocation3 + $0x58] sm:$0xff]
    %249 = vmatprep.subr.mxu0 0.0
    %250 = vmatpush1.xpose.msra.mxu0 0.0
    %251 = vmatprep.subr.mxu0 0.0
    %252 = vmatpush1.xpose.msra.mxu0 0.0
    %253 = vmatprep.subr.mxu0 0.0
    %254 = vmatpush1.xpose.msra.mxu0 0.0
    %255 = vmatprep.subr.mxu0 0.0
    %256 = vmatpush1.xpose.msra.mxu0 0.0
    %257 = vmatprep.subr.mxu0 0.0
    %258 = vmatpush1.xpose.msra.mxu0 %v236
    %259 = vmatprep.subr.mxu0 0.0
    %260 = vmatpush1.xpose.msra.mxu0 %v235
    %261 = vmatprep.subr.mxu0 0.0
    %262 = vmatpush1.xpose.msra.mxu0 %v234
    %263 = vmatprep.subr.mxu0 0.0
    %264 = vmatpush1.xpose.msra.mxu0 %v233
    %265 = vmatprep.subr.mxu0 0.0
    %266 = vmatpush1.xpose.msra.mxu0 %v232
    %267 = vmatprep.subr.mxu0 0.0
    %268 = vmatpush1.xpose.msra.mxu0 %v231
    %269 = vmatprep.subr.mxu0 0.0
    %270 = vmatpush1.xpose.msra.mxu0 %v230
    %271 = vmatprep.subr.mxu0 0.0
    %272 = vmatpush1.xpose.msra.mxu0 %v229
    %273 = vmatprep.subr.mxu0 0.0
    %274 = vmatpush1.xpose.msra.mxu0 %v228
    %275 = vmatprep.subr.mxu0 0.0
    %276 = vmatpush1.xpose.msra.mxu0 %v227
    %277 = vmatprep.subr.mxu0 0.0
    %278 = vmatpush1.xpose.msra.mxu0 %v226
    %279 = vmatprep.subr.mxu0 0.0
    %280 = vmatpush1.xpose.msra.mxu0 %v225
    %281 = vmatprep.subr.mxu0 0.0
    %282 = vmatpush2.xpose.msra.mxu0 0.0
    %283 = vmatprep.subr.mxu0 0.0
    %284 = vmatpush2.xpose.msra.mxu0 0.0
    %285 = vmatprep.subr.mxu0 0.0
    %286 = vmatpush2.xpose.msra.mxu0 0.0
    %287 = vmatprep.subr.mxu0 0.0
    %288 = vmatpush2.xpose.msra.mxu0 0.0
    %289 = vmatprep.subr.mxu0 0.0
    %290 = vmatpush2.xpose.msra.mxu0 0.0
    %291 = vmatprep.subr.mxu0 0.0
    %292 = vmatpush2.xpose.msra.mxu0 0.0
    %293 = vmatprep.subr.mxu0 0.0
    %294 = vmatpush2.xpose.msra.mxu0 0.0
    %295 = vmatprep.subr.mxu0 0.0
    %296 = vmatpush2.xpose.msra.mxu0 0.0
    %297 = vmatprep.subr.mxu0 0.0
    %298 = vmatpush2.xpose.msra.mxu0 0.0
    %299 = vmatprep.subr.mxu0 0.0
    %300 = vmatpush2.xpose.msra.mxu0 0.0
    %301 = vmatprep.subr.mxu0 0.0
    %302 = vmatpush2.xpose.msra.mxu0 0.0
    %303 = vmatprep.subr.mxu0 0.0
    %304 = vmatpush2.xpose.msra.mxu0 0.0
    %305 = vmatprep.subr.mxu0 0.0
    %306 = vmatpush2.xpose.msra.mxu0 0.0
    %307 = vmatprep.subr.mxu0 0.0
    %308 = vmatpush2.xpose.msra.mxu0 0.0
    %309 = vmatprep.subr.mxu0 0.0
    %310 = vmatpush2.xpose.msra.mxu0 0.0
    %311 = vmatprep.subr.mxu0 0.0
    %312 = vmatpush2.xpose.msra.mxu0 0.0
    %313 = vmatprep.mubr.f32.mxu0 0.0
    %314 = vmatmul.mubr.f32.gmra.mxu0 %v225
    %v315 = vpop.f32.mrf.mxu0
    %v316 = vadd.f32 0.0, %v315
    %v317 = vpop.f32.mrf.mxu0
    %318 = vmatprep.mubr.f32.mxu0 0.0
    %319 = vmatmul.mubr.f32.gmra.mxu0 %v226
    %v320 = vpop.f32.mrf.mxu0
    %v321 = vadd.f32 0.0, %v320
    %v322 = vpop.f32.mrf.mxu0
    %323 = vmatprep.mubr.f32.mxu0 0.0
    %324 = vmatmul.mubr.f32.gmra.mxu0 %v227
    %v325 = vpop.f32.mrf.mxu0
    %v326 = vadd.f32 0.0, %v325
    %v327 = vpop.f32.mrf.mxu0
    %328 = vmatprep.mubr.f32.mxu0 0.0
    %329 = vmatmul.mubr.f32.gmra.mxu0 %v228
    %v330 = vpop.f32.mrf.mxu0
    %v331 = vadd.f32 0.0, %v330
    %v332 = vpop.f32.mrf.mxu0
    %333 = vmatprep.mubr.f32.mxu0 0.0
    %334 = vmatmul.mubr.f32.gmra.mxu0 %v229
    %v335 = vpop.f32.mrf.mxu0
    %v336 = vadd.f32 0.0, %v335
    %v337 = vpop.f32.mrf.mxu0
    %338 = vmatprep.mubr.f32.mxu0 0.0
    %339 = vmatmul.mubr.f32.gmra.mxu0 %v230
    %v340 = vpop.f32.mrf.mxu0
    %v341 = vadd.f32 0.0, %v340
    %v342 = vpop.f32.mrf.mxu0
    %343 = vmatprep.mubr.f32.mxu0 0.0
    %344 = vmatmul.mubr.f32.gmra.mxu0 %v231
    %v345 = vpop.f32.mrf.mxu0
    %v346 = vadd.f32 0.0, %v345
    %v347 = vpop.f32.mrf.mxu0
    %348 = vmatprep.mubr.f32.mxu0 0.0
    %349 = vmatmul.mubr.f32.gmra.mxu0 %v232
    %v350 = vpop.f32.mrf.mxu0
    %v351 = vadd.f32 0.0, %v350
    %v352 = vpop.f32.mrf.mxu0
    %353 = vmatprep.mubr.f32.mxu0 0.0
    %354 = vmatmul.mubr.f32.gmra.mxu0 %v233
    %v355 = vpop.f32.mrf.mxu0
    %v356 = vadd.f32 0.0, %v355
    %v357 = vpop.f32.mrf.mxu0
    %358 = vmatprep.mubr.f32.mxu0 0.0
    %359 = vmatmul.mubr.f32.gmra.mxu0 %v234
    %v360 = vpop.f32.mrf.mxu0
    %v361 = vadd.f32 0.0, %v360
    %v362 = vpop.f32.mrf.mxu0
    %363 = vmatprep.mubr.f32.mxu0 0.0
    %364 = vmatmul.mubr.f32.gmra.mxu0 %v235
    %v365 = vpop.f32.mrf.mxu0
    %v366 = vadd.f32 0.0, %v365
    %v367 = vpop.f32.mrf.mxu0
    %368 = vmatprep.mubr.f32.mxu0 0.0
    %369 = vmatmul.mubr.f32.gmra.mxu0 %v236
    %v370 = vpop.f32.mrf.mxu0
    %v371 = vadd.f32 0.0, %v370
    %v372 = vpop.f32.mrf.mxu0
    %373 = vdwg.mxu0
    %374 = vmatprep.subr.mxu0 0.0
    %375 = vmatpush1.xpose.msra.mxu0 0.0
    %376 = vmatprep.subr.mxu0 0.0
    %377 = vmatpush1.xpose.msra.mxu0 0.0
    %378 = vmatprep.subr.mxu0 0.0
    %379 = vmatpush1.xpose.msra.mxu0 0.0
    %380 = vmatprep.subr.mxu0 0.0
    %381 = vmatpush1.xpose.msra.mxu0 0.0
    %382 = vmatprep.subr.mxu0 0.0
    %383 = vmatpush1.xpose.msra.mxu0 %v248
    %384 = vmatprep.subr.mxu0 0.0
    %385 = vmatpush1.xpose.msra.mxu0 %v247
    %386 = vmatprep.subr.mxu0 0.0
    %387 = vmatpush1.xpose.msra.mxu0 %v246
    %388 = vmatprep.subr.mxu0 0.0
    %389 = vmatpush1.xpose.msra.mxu0 %v245
    %390 = vmatprep.subr.mxu0 0.0
    %391 = vmatpush1.xpose.msra.mxu0 %v244
    %392 = vmatprep.subr.mxu0 0.0
    %393 = vmatpush1.xpose.msra.mxu0 %v243
    %394 = vmatprep.subr.mxu0 0.0
    %395 = vmatpush1.xpose.msra.mxu0 %v242
    %396 = vmatprep.subr.mxu0 0.0
    %397 = vmatpush1.xpose.msra.mxu0 %v241
    %398 = vmatprep.subr.mxu0 0.0
    %399 = vmatpush1.xpose.msra.mxu0 %v240
    %400 = vmatprep.subr.mxu0 0.0
    %401 = vmatpush1.xpose.msra.mxu0 %v239
    %402 = vmatprep.subr.mxu0 0.0
    %403 = vmatpush1.xpose.msra.mxu0 %v238
    %404 = vmatprep.subr.mxu0 0.0
    %405 = vmatpush1.xpose.msra.mxu0 %v237
    %406 = vmatprep.subr.mxu0 0.0
    %407 = vmatpush2.xpose.msra.mxu0 0.0
    %408 = vmatprep.subr.mxu0 0.0
    %409 = vmatpush2.xpose.msra.mxu0 0.0
    %410 = vmatprep.subr.mxu0 0.0
    %411 = vmatpush2.xpose.msra.mxu0 0.0
    %412 = vmatprep.subr.mxu0 0.0
    %413 = vmatpush2.xpose.msra.mxu0 0.0
    %414 = vmatprep.subr.mxu0 0.0
    %415 = vmatpush2.xpose.msra.mxu0 0.0
    %416 = vmatprep.subr.mxu0 0.0
    %417 = vmatpush2.xpose.msra.mxu0 0.0
    %418 = vmatprep.subr.mxu0 0.0
    %419 = vmatpush2.xpose.msra.mxu0 0.0
    %420 = vmatprep.subr.mxu0 0.0
    %421 = vmatpush2.xpose.msra.mxu0 0.0
    %422 = vmatprep.subr.mxu0 0.0
    %423 = vmatpush2.xpose.msra.mxu0 0.0
    %424 = vmatprep.subr.mxu0 0.0
    %425 = vmatpush2.xpose.msra.mxu0 0.0
    %426 = vmatprep.subr.mxu0 0.0
    %427 = vmatpush2.xpose.msra.mxu0 0.0
    %428 = vmatprep.subr.mxu0 0.0
    %429 = vmatpush2.xpose.msra.mxu0 0.0
    %430 = vmatprep.subr.mxu0 0.0
    %431 = vmatpush2.xpose.msra.mxu0 0.0
    %432 = vmatprep.subr.mxu0 0.0
    %433 = vmatpush2.xpose.msra.mxu0 0.0
    %434 = vmatprep.subr.mxu0 0.0
    %435 = vmatpush2.xpose.msra.mxu0 0.0
    %436 = vmatprep.subr.mxu0 0.0
    %437 = vmatpush2.xpose.msra.mxu0 0.0
    %438 = vmatprep.mubr.f32.mxu0 0.0
    %439 = vmatmul.mubr.f32.gmra.mxu0 %v237
    %v440 = vpop.f32.mrf.mxu0
    %v441 = vadd.f32 0.0, %v440
    %v442 = vpop.f32.mrf.mxu0
    %443 = vmatprep.mubr.f32.mxu0 0.0
    %444 = vmatmul.mubr.f32.gmra.mxu0 %v238
    %v445 = vpop.f32.mrf.mxu0
    %v446 = vadd.f32 0.0, %v445
    %v447 = vpop.f32.mrf.mxu0
    %448 = vmatprep.mubr.f32.mxu0 0.0
    %449 = vmatmul.mubr.f32.gmra.mxu0 %v239
    %v450 = vpop.f32.mrf.mxu0
    %v451 = vadd.f32 0.0, %v450
    %v452 = vpop.f32.mrf.mxu0
    %453 = vmatprep.mubr.f32.mxu0 0.0
    %454 = vmatmul.mubr.f32.gmra.mxu0 %v240
    %v455 = vpop.f32.mrf.mxu0
    %v456 = vadd.f32 0.0, %v455
    %v457 = vpop.f32.mrf.mxu0
    %458 = vmatprep.mubr.f32.mxu0 0.0
    %459 = vmatmul.mubr.f32.gmra.mxu0 %v241
    %v460 = vpop.f32.mrf.mxu0
    %v461 = vadd.f32 0.0, %v460
    %v462 = vpop.f32.mrf.mxu0
    %463 = vmatprep.mubr.f32.mxu0 0.0
    %464 = vmatmul.mubr.f32.gmra.mxu0 %v242
    %v465 = vpop.f32.mrf.mxu0
    %v466 = vadd.f32 0.0, %v465
    %v467 = vpop.f32.mrf.mxu0
    %468 = vmatprep.mubr.f32.mxu0 0.0
    %469 = vmatmul.mubr.f32.gmra.mxu0 %v243
    %v470 = vpop.f32.mrf.mxu0
    %v471 = vadd.f32 0.0, %v470
    %v472 = vpop.f32.mrf.mxu0
    %473 = vmatprep.mubr.f32.mxu0 0.0
    %474 = vmatmul.mubr.f32.gmra.mxu0 %v244
    %v475 = vpop.f32.mrf.mxu0
    %v476 = vadd.f32 0.0, %v475
    %v477 = vpop.f32.mrf.mxu0
    %478 = vmatprep.mubr.f32.mxu0 0.0
    %479 = vmatmul.mubr.f32.gmra.mxu0 %v245
    %v480 = vpop.f32.mrf.mxu0
    %v481 = vadd.f32 0.0, %v480
    %v482 = vpop.f32.mrf.mxu0
    %483 = vmatprep.mubr.f32.mxu0 0.0
    %484 = vmatmul.mubr.f32.gmra.mxu0 %v246
    %v485 = vpop.f32.mrf.mxu0
    %v486 = vadd.f32 0.0, %v485
    %v487 = vpop.f32.mrf.mxu0
    %488 = vmatprep.mubr.f32.mxu0 0.0
    %489 = vmatmul.mubr.f32.gmra.mxu0 %v247
    %v490 = vpop.f32.mrf.mxu0
    %v491 = vadd.f32 0.0, %v490
    %v492 = vpop.f32.mrf.mxu0
    %493 = vmatprep.mubr.f32.mxu0 0.0
    %494 = vmatmul.mubr.f32.gmra.mxu0 %v248
    %v495 = vpop.f32.mrf.mxu0
    %v496 = vadd.f32 0.0, %v495
    %v497 = vpop.f32.mrf.mxu0
    %498 = vdwg.mxu0
    %v499 = vsub.f32 %v316, %v441
    %v500 = vsub.f32 %v321, %v446
    %v501 = vsub.f32 %v326, %v451
    %v502 = vsub.f32 %v331, %v456
    %v503 = vsub.f32 %v336, %v461
    %v504 = vsub.f32 %v341, %v466
    %v505 = vsub.f32 %v346, %v471
    %v506 = vsub.f32 %v351, %v476
    %v507 = vsub.f32 %v356, %v481
    %v508 = vsub.f32 %v361, %v486
    %v509 = vsub.f32 %v366, %v491
    %v510 = vsub.f32 %v371, %v496
    %v511 = vld [vmem:[%s0] sm:$0xff]
    %v512 = vld [vmem:[%s0 + $0x8] sm:$0xff]
    %v513 = vld [vmem:[%s0 + $0x10] sm:$0xff]
    %v514 = vld [vmem:[%s0 + $0x18] sm:$0xff]
    %v515 = vld [vmem:[%s0 + $0x20] sm:$0xff]
    %v516 = vld [vmem:[%s0 + $0x28] sm:$0xff]
    %v517 = vld [vmem:[%s0 + $0x30] sm:$0xff]
    %v518 = vld [vmem:[%s0 + $0x38] sm:$0xff]
    %v519 = vld [vmem:[%s0 + $0x40] sm:$0xff]
    %v520 = vld [vmem:[%s0 + $0x48] sm:$0xff]
    %v521 = vld [vmem:[%s0 + $0x50] sm:$0xff]
    %v522 = vld [vmem:[%s0 + $0x58] sm:$0xff]
    %v523 = vld [vmem:[%s1] sm:$0x1]
    %v524 = vld [vmem:[%s2] sm:$0xff]
    %v525 = vld [vmem:[%s2 + $0x8] sm:$0xff]
    %v526 = vld [vmem:[%s2 + $0x10] sm:$0xff]
    %v527 = vld [vmem:[%s2 + $0x18] sm:$0xff]
    %v528 = vld [vmem:[%s2 + $0x20] sm:$0xff]
    %v529 = vld [vmem:[%s2 + $0x28] sm:$0xff]
    %v530 = vld [vmem:[%s2 + $0x30] sm:$0xff]
    %v531 = vld [vmem:[%s2 + $0x38] sm:$0xff]
    %v532 = vld [vmem:[%s2 + $0x40] sm:$0xff]
    %v533 = vld [vmem:[%s2 + $0x48] sm:$0xff]
    %v534 = vld [vmem:[%s2 + $0x50] sm:$0xff]
    %v535 = vld [vmem:[%s2 + $0x58] sm:$0xff]
    %537 = vset.pattern.permute.xlu0 0
    %538 = vperm.xlu0 %537, %v511
    %v539 = vpop.permute.xlu0 %538
    %542 = vset.pattern.permute.xlu0 0
    %543 = vperm.xlu0 %542, %v512
    %v544 = vpop.permute.xlu0 %543
    %547 = vset.pattern.permute.xlu0 0
    %548 = vperm.xlu0 %547, %v513
    %v549 = vpop.permute.xlu0 %548
    %552 = vset.pattern.permute.xlu0 0
    %553 = vperm.xlu0 %552, %v514
    %v554 = vpop.permute.xlu0 %553
    %557 = vset.pattern.permute.xlu0 0
    %558 = vperm.xlu0 %557, %v515
    %v559 = vpop.permute.xlu0 %558
    %562 = vset.pattern.permute.xlu0 0
    %563 = vperm.xlu0 %562, %v516
    %v564 = vpop.permute.xlu0 %563
    %567 = vset.pattern.permute.xlu0 0
    %568 = vperm.xlu0 %567, %v517
    %v569 = vpop.permute.xlu0 %568
    %572 = vset.pattern.permute.xlu0 0
    %573 = vperm.xlu0 %572, %v518
    %v574 = vpop.permute.xlu0 %573
    %577 = vset.pattern.permute.xlu0 0
    %578 = vperm.xlu0 %577, %v519
    %v579 = vpop.permute.xlu0 %578
    %582 = vset.pattern.permute.xlu0 0
    %583 = vperm.xlu0 %582, %v520
    %v584 = vpop.permute.xlu0 %583
    %587 = vset.pattern.permute.xlu0 0
    %588 = vperm.xlu0 %587, %v521
    %v589 = vpop.permute.xlu0 %588
    %592 = vset.pattern.permute.xlu0 0
    %593 = vperm.xlu0 %592, %v522
    %v594 = vpop.permute.xlu0 %593
    %v597 = vlaneseq
    %v598 = vshrl.u32 %v597, 7
    %v599 = vsub.s32 0, %v598
    %v600 = vrot.slane %v523, %v599
    %vm602 = vcmp.eq.f32.partialorder %v539, %v600
    %vm603 = vcmp.eq.f32.partialorder %v544, %v600
    %vm604 = vcmp.eq.f32.partialorder %v549, %v600
    %vm605 = vcmp.eq.f32.partialorder %v554, %v600
    %vm606 = vcmp.eq.f32.partialorder %v559, %v600
    %vm607 = vcmp.eq.f32.partialorder %v564, %v600
    %vm608 = vcmp.eq.f32.partialorder %v569, %v600
    %vm609 = vcmp.eq.f32.partialorder %v574, %v600
    %vm610 = vcmp.eq.f32.partialorder %v579, %v600
    %vm611 = vcmp.eq.f32.partialorder %v584, %v600
    %vm612 = vcmp.eq.f32.partialorder %v589, %v600
    %vm613 = vcmp.eq.f32.partialorder %v594, %v600
    %615 = vset.pattern.permute.xlu0 0
    %616 = vperm.xlu0 %615, %v524
    %v617 = vpop.permute.xlu0 %616
    %620 = vset.pattern.permute.xlu0 0
    %621 = vperm.xlu0 %620, %v525
    %v622 = vpop.permute.xlu0 %621
    %625 = vset.pattern.permute.xlu0 0
    %626 = vperm.xlu0 %625, %v526
    %v627 = vpop.permute.xlu0 %626
    %630 = vset.pattern.permute.xlu0 0
    %631 = vperm.xlu0 %630, %v527
    %v632 = vpop.permute.xlu0 %631
    %635 = vset.pattern.permute.xlu0 0
    %636 = vperm.xlu0 %635, %v528
    %v637 = vpop.permute.xlu0 %636
    %640 = vset.pattern.permute.xlu0 0
    %641 = vperm.xlu0 %640, %v529
    %v642 = vpop.permute.xlu0 %641
    %645 = vset.pattern.permute.xlu0 0
    %646 = vperm.xlu0 %645, %v530
    %v647 = vpop.permute.xlu0 %646
    %650 = vset.pattern.permute.xlu0 0
    %651 = vperm.xlu0 %650, %v531
    %v652 = vpop.permute.xlu0 %651
    %655 = vset.pattern.permute.xlu0 0
    %656 = vperm.xlu0 %655, %v532
    %v657 = vpop.permute.xlu0 %656
    %660 = vset.pattern.permute.xlu0 0
    %661 = vperm.xlu0 %660, %v533
    %v662 = vpop.permute.xlu0 %661
    %665 = vset.pattern.permute.xlu0 0
    %666 = vperm.xlu0 %665, %v534
    %v667 = vpop.permute.xlu0 %666
    %670 = vset.pattern.permute.xlu0 0
    %671 = vperm.xlu0 %670, %v535
    %v672 = vpop.permute.xlu0 %671
    %v674 = vsel %vm602, %v617, 0.0
    %v675 = vsel %vm603, %v622, 0.0
    %v676 = vsel %vm604, %v627, 0.0
    %v677 = vsel %vm605, %v632, 0.0
    %v678 = vsel %vm606, %v637, 0.0
    %v679 = vsel %vm607, %v642, 0.0
    %v680 = vsel %vm608, %v647, 0.0
    %v681 = vsel %vm609, %v652, 0.0
    %v682 = vsel %vm610, %v657, 0.0
    %v683 = vsel %vm611, %v662, 0.0
    %v684 = vsel %vm612, %v667, 0.0
    %v685 = vsel %vm613, %v672, 0.0
    %v686 = vmul.f32 %v674, %v499
    %v687 = vmul.f32 %v675, %v500
    %v688 = vmul.f32 %v676, %v501
    %v689 = vmul.f32 %v677, %v502
    %v690 = vmul.f32 %v678, %v503
    %v691 = vmul.f32 %v679, %v504
    %v692 = vmul.f32 %v680, %v505
    %v693 = vmul.f32 %v681, %v506
    %v694 = vmul.f32 %v682, %v507
    %v695 = vmul.f32 %v683, %v508
    %v696 = vmul.f32 %v684, %v509
    %v697 = vmul.f32 %v685, %v510
    %v698 = vmul.f32 %v686, %v499
    %v699 = vmul.f32 %v687, %v500
    %v700 = vmul.f32 %v688, %v501
    %v701 = vmul.f32 %v689, %v502
    %v702 = vmul.f32 %v690, %v503
    %v703 = vmul.f32 %v691, %v504
    %v704 = vmul.f32 %v692, %v505
    %v705 = vmul.f32 %v693, %v506
    %v706 = vmul.f32 %v694, %v507
    %v707 = vmul.f32 %v695, %v508
    %v708 = vmul.f32 %v696, %v509
    %v709 = vmul.f32 %v697, %v510
    %vm710 = vcmask 785408
    %v711 = vsel %vm710, %v698, 0.0
    %v712 = vsel %vm710, %v699, 0.0
    %v713 = vadd.f32 %v711, %v712
    %v714 = vsel %vm710, %v700, 0.0
    %v715 = vadd.f32 %v713, %v714
    %v716 = vsel %vm710, %v701, 0.0
    %v717 = vadd.f32 %v715, %v716
    %v718 = vsel %vm710, %v702, 0.0
    %v719 = vadd.f32 %v717, %v718
    %v720 = vsel %vm710, %v703, 0.0
    %v721 = vadd.f32 %v719, %v720
    %v722 = vsel %vm710, %v704, 0.0
    %v723 = vadd.f32 %v721, %v722
    %v724 = vsel %vm710, %v705, 0.0
    %v725 = vadd.f32 %v723, %v724
    %v726 = vsel %vm710, %v706, 0.0
    %v727 = vadd.f32 %v725, %v726
    %v728 = vsel %vm710, %v707, 0.0
    %v729 = vadd.f32 %v727, %v728
    %v730 = vsel %vm710, %v708, 0.0
    %v731 = vadd.f32 %v729, %v730
    %v732 = vsel %vm710, %v709, 0.0
    %v733 = vadd.f32 %v731, %v732
    %734 = vadd.xlane.f32.xlu0 %v733
    %v735 = vpop.xlane.xlu0 %734
    %v736 = vrot.slane %v735, 4
    %v737 = vadd.f32 %v735, %v736
    %v738 = vrot.slane %v737, 2
    %v739 = vadd.f32 %v737, %v738
    %v740 = vrot.slane %v739, 1
    %v741 = vadd.f32 %v739, %v740
    %s742 = vtos %v741
    %s743 = sadd.f32 %s742, 0.0
    %v744 = vstv %s743
    %745 = vst [vmem:[#allocation4] sm:$0x1] %v744
    // Predicated region
    $region38: #{tpu_custom_call.1} parent=1 // pred_check
      _
    $region39: #{tpu_custom_call.1} parent=1 // pred_check_branch
      %747 = sbr.rel (0) target = $region41
    $region40: #{tpu_custom_call.1} parent=1 // pred_region
      %s749 = ssub.s32 16, 16
      %750 = vsyncadd [#allocation5], %s749
      %s752 = sshll.u32 [#allocation4], 4
      %s753 = int_to_ptr.vmem [resolvable:$true] %s752
      %755 = dma.vmem_to_hbm [thread:$0]  %s753, 16, %s9, [#allocation5]
    $region41: #{tpu_custom_call.1} parent=1 // pred_fallthru
      _
    // Predicated region
    $region42: #{tpu_custom_call.1} parent=1 // pred_check
      _
    $region43: #{tpu_custom_call.1} parent=1 // pred_check_branch
      %757 = sbr.rel (0) target = $region45
    $region44: #{tpu_custom_call.1} parent=1 // pred_region
      %758 = dma.done [#allocation5], 16
    $region45: #{tpu_custom_call.1} parent=1 // pred_fallthru
      _
    %759 = vsyncpa [#allocation5], 1

</llo_original>
